<compile_context>
chip_gen: v6e
topology: v6e:2x2x1
jax: 0.10.0
libtpu: 0.0.40
codegen_flags: <defaults>
</compile_context>

<pallas_src>
import functools

import jax
import jax.numpy as jnp
from jax.experimental import pallas as pl
from jax.experimental.pallas import tpu as pltpu


def _round_up(x, m):
    return ((x + m - 1) // m) * m


# --------------------------------------------------------------------------
# Kernel 1/2: row-tiled linear (x @ w + b); W and bias fully resident in VMEM.
# --------------------------------------------------------------------------
def _linear_kernel(x_ref, w_ref, b_ref, o_ref):
    # x_ref: (tm, K), w_ref: (K, D) resident, b_ref: (1, D) f32, o_ref: (tm, D)
    acc = jnp.dot(x_ref[...], w_ref[...], preferred_element_type=jnp.float32)
    o_ref[...] = (acc + b_ref[...]).astype(o_ref.dtype)


def linear_pallas(x2d, w, b=None, *, tm_max=256, out_dtype=None):
    """x2d: (M, K), w: (K, D), b: (D,) or None -> (M, D).

    Grid only over row tiles; the whole (K, D) weight stays resident in VMEM
    (index_map is constant), so it is fetched from HBM once per pallas_call.
    For ViT sizes (K=768, D=2304 bf16 ~ 3.5 MiB) this fits the default scoped
    VMEM limit on v5e/v6e/v7x with tm=256; bump tm on v6e (128 MiB VMEM) only.
    """
    M, K = x2d.shape
    Kw, D = w.shape
    assert K == Kw, (K, Kw)
    out_dtype = out_dtype or x2d.dtype

    tm = min(tm_max, _round_up(M, 8))
    grid_m = pl.cdiv(M, tm)

    if b is None:
        b2 = jnp.zeros((1, D), jnp.float32)
    else:
        b2 = b.astype(jnp.float32).reshape(1, D)

    itemsize = lambda a: a.size * a.dtype.itemsize
    cost = pl.CostEstimate(
        flops=2 * M * K * D,
        transcendentals=0,
        bytes_accessed=itemsize(x2d) + itemsize(w) + itemsize(b2)
        + M * D * jnp.dtype(out_dtype).itemsize,
    )

    return pl.pallas_call(
        _linear_kernel,
        out_shape=jax.ShapeDtypeStruct((M, D), out_dtype),
        grid_spec=pltpu.PrefetchScalarGridSpec(
            num_scalar_prefetch=0,
            grid=(grid_m,),
            in_specs=[
                pl.BlockSpec((tm, K), lambda i: (i, 0)),   # row tile of x
                pl.BlockSpec((K, D), lambda i: (0, 0)),    # full W, resident
                pl.BlockSpec((1, D), lambda i: (0, 0)),    # bias, resident
            ],
            out_specs=pl.BlockSpec((tm, D), lambda i: (i, 0)),
        ),
        compiler_params=pltpu.CompilerParams(
            dimension_semantics=("parallel",)
        ),
        cost_estimate=cost,
    )(x2d, w, b2)


# --------------------------------------------------------------------------
# Kernel 2/2: fused multi-head self-attention + output projection for one
# batch row. q/k/v are static column slices of the qkv activation inside the
# kernel (no head transpose in HBM); per-head PV results are accumulated into
# a (N, C) f32 VMEM scratch, then projected with the resident proj weight and
# stored once (single lane-dense (N, C) store per batch row).
# --------------------------------------------------------------------------
def _mha_proj_kernel(qkv_ref, pw_ref, pb_ref, o_ref, acc_ref, *,
                     num_heads, head_dim, scale):
    # qkv_ref: (1, N, 3C), pw_ref: (C, C), pb_ref: (1, C) f32,
    # o_ref: (1, N, C), acc_ref: VMEM (N, C) f32 scratch.
    C = num_heads * head_dim
    for h in range(num_heads):                       # static unroll over heads
        lo = h * head_dim
        # Fold the softmax scale into q (N*dh mults instead of N*N).
        qh = qkv_ref[0, :, lo:lo + head_dim] * scale              # (N, dh) bf16
        kh = qkv_ref[0, :, C + lo:C + lo + head_dim]              # (N, dh) bf16
        vh = qkv_ref[0, :, 2 * C + lo:2 * C + lo + head_dim]      # (N, dh) bf16
        # NT contraction over dh (no explicit kh.T / XLU transpose).
        s = jax.lax.dot_general(
            qh, kh,
            dimension_numbers=(((1,), (1,)), ((), ())),
            preferred_element_type=jnp.float32)                   # (N, N) f32
        m = jnp.max(s, axis=-1, keepdims=True)
        p = jnp.exp(s - m)                                        # (N, N) f32
        row_sum = jnp.sum(p, axis=-1, keepdims=True)              # (N, 1) f32
        # attn_drop is p=0.0 -> identity.
        # Keep p in f32 through PV (accuracy); normalize after PV with an
        # approx reciprocal (EUP slot) on the (N, dh) result.
        pv = jnp.dot(p, vh.astype(jnp.float32),
                     preferred_element_type=jnp.float32)          # (N, dh) f32
        inv = pl.reciprocal(row_sum, approx=True)                 # (N, 1)  f32
        acc_ref[:, lo:lo + head_dim] = pv * inv
    # Fused output projection: (N, C) @ (C, C) + bias, resident weights.
    attn_out = acc_ref[...].astype(pw_ref.dtype)                  # (N, C) bf16
    out = jnp.dot(attn_out, pw_ref[...], preferred_element_type=jnp.float32)
    out = out + pb_ref[...]
    # proj_drop is p=0.0 -> identity.
    o_ref[0] = out.astype(o_ref.dtype)


def mha_proj_pallas(qkv, proj_wt, proj_b, num_heads, *, out_dtype):
    """qkv: (B, N, 3C), proj_wt: (C, C) (already transposed), proj_b: (C,)
    -> (B, N, C)."""
    B, N, D3 = qkv.shape
    assert D3 % 3 == 0, D3
    C = D3 // 3
    assert C % num_heads == 0, (C, num_heads)
    head_dim = C // num_heads
    scale = head_dim ** (-0.5)

    pb2 = proj_b.astype(jnp.float32).reshape(1, C)

    kernel = functools.partial(
        _mha_proj_kernel, num_heads=num_heads, head_dim=head_dim, scale=scale)

    cost = pl.CostEstimate(
        flops=B * (4 * num_heads * N * N * head_dim + 2 * N * C * C),
        transcendentals=B * num_heads * N * N,          # exp
        bytes_accessed=qkv.size * qkv.dtype.itemsize
        + proj_wt.size * proj_wt.dtype.itemsize
        + pb2.size * pb2.dtype.itemsize
        + B * N * C * jnp.dtype(out_dtype).itemsize,
    )

    return pl.pallas_call(
        kernel,
        out_shape=jax.ShapeDtypeStruct((B, N, C), out_dtype),
        grid_spec=pltpu.PrefetchScalarGridSpec(
            num_scalar_prefetch=0,
            grid=(B,),
            in_specs=[
                pl.BlockSpec((1, N, D3), lambda b: (b, 0, 0)),   # one batch row
                pl.BlockSpec((C, C), lambda b: (0, 0)),          # proj W resident
                pl.BlockSpec((1, C), lambda b: (0, 0)),          # proj bias resident
            ],
            out_specs=pl.BlockSpec((1, N, C), lambda b: (b, 0, 0)),
            scratch_shapes=[pltpu.VMEM((N, C), jnp.float32)],    # head-concat acc
        ),
        compiler_params=pltpu.CompilerParams(
            dimension_semantics=("parallel",)   # shard batch rows across TCs (v7x)
        ),
        cost_estimate=cost,
    )(qkv, proj_wt, pb2)


# --------------------------------------------------------------------------
# Full module forward: x, H, W -> (B, N, C)
# --------------------------------------------------------------------------
def attention_forward(x, H, W, qkv_w, qkv_b, proj_w, proj_b, *,
                      num_heads, compute_dtype=jnp.bfloat16):
    """x: (B, N, C). qkv_w: (3C, C) (PyTorch nn.Linear layout), qkv_b: (3C,) or
    None (qkv_bias=False). proj_w: (C, C), proj_b: (C,).
    H, W are accepted for signature parity with the PyTorch module (unused)."""
    del H, W
    B, N, C = x.shape
    assert C % num_heads == 0, (C, num_heads)
    assert qkv_w.shape == (3 * C, C), qkv_w.shape
    assert proj_w.shape == (C, C), proj_w.shape

    # bf16 operands for the MXU (f32 accumulation inside the kernels).
    xc = x.astype(compute_dtype).reshape(B * N, C)
    qkv_wt = qkv_w.T.astype(compute_dtype)            # (C, 3C)
    proj_wt = proj_w.T.astype(compute_dtype)          # (C, C)

    qkv2d = linear_pallas(xc, qkv_wt, qkv_b)          # (B*N, 3C), compute dtype
    qkv = qkv2d.reshape(B, N, 3 * C)

    # Fused multi-head attention + output projection (+ bias) in one kernel:
    # saves the (B, N, C) attention-output HBM round trip entirely.
    return mha_proj_pallas(qkv, proj_wt, proj_b, num_heads, out_dtype=x.dtype)


if __name__ == "__main__":
    # Small shapes consistent with the module: batch=2, seq=8, dim=32.
    B, N, C = 2, 8, 32
    num_heads = 4                      # head_dim = 8
    Himg, Wimg = 4, 2                  # N == H * W (module only passes these)

    key = jax.random.PRNGKey(0)
    kx, kq, kp, kb = jax.random.split(key, 4)
    x = jax.random.normal(kx, (B, N, C), dtype=jnp.float32)
    qkv_w = jax.random.normal(kq, (3 * C, C), dtype=jnp.float32) * 0.1
    proj_w = jax.random.normal(kp, (C, C), dtype=jnp.float32) * 0.1
    proj_b = jax.random.normal(kb, (C,), dtype=jnp.float32) * 0.1

    out = attention_forward(x, Himg, Wimg, qkv_w, None, proj_w, proj_b,
                            num_heads=num_heads, compute_dtype=jnp.bfloat16)
    out = jax.block_until_ready(out)

    # Pure-JAX reference of the same semantics, in f32, with inputs/weights
    # pre-cast to bf16 so the check isolates kernel math from bf16 quantization.
    def ref_attention(xf, qw, pw, pb, nh):
        Bv, Nv, Cv = xf.shape
        dh = Cv // nh
        scale = dh ** (-0.5)
        qkv = xf @ qw.T
        qkv = qkv.reshape(Bv, Nv, 3, nh, dh).transpose(2, 0, 3, 1, 4)
        q, k, v = qkv[0], qkv[1], qkv[2]
        attn = jnp.einsum("bhnd,bhmd->bhnm", q, k) * scale
        attn = jax.nn.softmax(attn, axis=-1)
        o = jnp.einsum("bhnm,bhmd->bhnd", attn, v)
        o = o.transpose(0, 2, 1, 3).reshape(Bv, Nv, Cv)
        return o @ pw.T + pb

    cast = lambda a: a.astype(jnp.bfloat16).astype(jnp.float32)
    ref = ref_attention(cast(x), cast(qkv_w), cast(proj_w), proj_b, num_heads)

    assert out.shape == (B, N, C)
    err = float(jnp.max(jnp.abs(out.astype(jnp.float32) - ref)))
    assert jnp.allclose(out.astype(jnp.float32), ref, atol=2e-2, rtol=2e-2), err

    print("KERNEL_OK")
</pallas_src>

<mosaic_0001>
module attributes {stable_mosaic.version = 11 : i64} {
  func.func @_linear_kernel(%arg0: i32, %arg1: memref<16x32xbf16, #tpu.memory_space<vmem>>, %arg2: memref<32x96xbf16, #tpu.memory_space<vmem>>, %arg3: memref<1x96xf32, #tpu.memory_space<vmem>>, %arg4: memref<16x96xbf16, #tpu.memory_space<vmem>>) attributes {dimension_semantics = [#tpu.dimension_semantics<parallel>], iteration_bounds = array<i64: 1>, scalar_prefetch = 0 : i64, scratch_operands = 0 : i64, tpu.core_type = #tpu.core_type<tc>, window_params = [{transform_indices = @transform_0, window_bounds = array<i64: 16, 32>}, {pipeline_mode = #tpu.pipeline_mode<synchronous>, transform_indices = @transform_1, window_bounds = array<i64: 32, 96>}, {pipeline_mode = #tpu.pipeline_mode<synchronous>, transform_indices = @transform_2, window_bounds = array<i64: 1, 96>}, {transform_indices = @transform_3, window_bounds = array<i64: 16, 96>}]} {
    %c0 = arith.constant 0 : index
    %c0_0 = arith.constant 0 : index
    %0 = vector.load %arg1[%c0, %c0_0] : memref<16x32xbf16, #tpu.memory_space<vmem>>, vector<16x32xbf16>
    %c0_1 = arith.constant 0 : index
    %c0_2 = arith.constant 0 : index
    %1 = vector.load %arg2[%c0_1, %c0_2] : memref<32x96xbf16, #tpu.memory_space<vmem>>, vector<32x96xbf16>
    %cst = arith.constant dense<0.000000e+00> : vector<16x96xf32>
    %2 = tpu.matmul %0, %1, %cst {dimension_numbers = #tpu.dot_dimension_numbers<[1], [0], [0], [1], [0, 0, 1, 1], [], []>} : vector<16x32xbf16>, vector<32x96xbf16>, vector<16x96xf32> -> vector<16x96xf32>
    %c0_3 = arith.constant 0 : index
    %c0_4 = arith.constant 0 : index
    %3 = vector.load %arg3[%c0_3, %c0_4] : memref<1x96xf32, #tpu.memory_space<vmem>>, vector<1x96xf32>
    %4 = vector.broadcast %3 : vector<1x96xf32> to vector<16x96xf32>
    %5 = arith.addf %2, %4 : vector<16x96xf32>
    %6 = arith.truncf %5 : vector<16x96xf32> to vector<16x96xbf16>
    %c0_5 = arith.constant 0 : index
    %c0_6 = arith.constant 0 : index
    %7 = vector.load %arg4[%c0_5, %c0_6] : memref<16x96xbf16, #tpu.memory_space<vmem>>, vector<16x96xbf16>
    tpu.vector_store %arg4[%c0_5, %c0_6], %6 {strides = array<i32>} : memref<16x96xbf16, #tpu.memory_space<vmem>>, vector<16x96xbf16>,
    return
  }
  func.func @transform_0(%arg0: i32) -> (i32, i32) {
    %c0_i32 = arith.constant 0 : i32
    %c0_i32_0 = arith.constant 0 : i32
    return %arg0, %c0_i32 : i32, i32
  }
  func.func @transform_1(%arg0: i32) -> (i32, i32) {
    %c0_i32 = arith.constant 0 : i32
    %c0_i32_0 = arith.constant 0 : i32
    %c0_i32_1 = arith.constant 0 : i32
    return %c0_i32, %c0_i32_0 : i32, i32
  }
  func.func @transform_2(%arg0: i32) -> (i32, i32) {
    %c0_i32 = arith.constant 0 : i32
    %c0_i32_0 = arith.constant 0 : i32
    %c0_i32_1 = arith.constant 0 : i32
    return %c0_i32, %c0_i32_0 : i32, i32
  }
  func.func @transform_3(%arg0: i32) -> (i32, i32) {
    %c0_i32 = arith.constant 0 : i32
    %c0_i32_0 = arith.constant 0 : i32
    return %arg0, %c0_i32 : i32, i32
  }
}

</mosaic_0001>

<llo_original>
// kernel: tpu_custom_call.1
$region0: #{tpu_custom_call.1}
  #allocation0 [shape = 'u32[]', space=smem, size = 0x4, offset = 0x4, fixed_abs, tag = 'smem constant byte address 0x4 - core index']
  #allocation1 [shape = 'u32[144,128]{1,0:T(1,128)}', space=vmem, size = 0x12000, scoped, tag = 'internal scratch']
  %s0 = inlined_call_operand.hbm [shape: bf16[16,32], index: 0, kind: input, shape index: {}]
  %s1 = inlined_call_operand.hbm [shape: bf16[32,96], index: 1, kind: input, shape index: {}]
  %s2 = inlined_call_operand.vmem [shape: f32[1,96], index: 2, kind: input, shape index: {}]
  %s3 = inlined_call_operand.hbm [shape: bf16[16,96], index: 3, kind: output, shape index: {}]
  %s4 = sld [smem:[#allocation0]]
  $region30: #{tpu_custom_call.1} parent=0
    _
  %s6 = ssub.s32 1, %s4
  %s7 = scalar_select 0, %s6, %s4
  $region1: #{tpu_custom_call.1} parent=0
    #allocation2 [shape = 'u8[4096]{0}', space=vmem, size = 0x1000, scoped, tag = 'input window, operand 0, single buffered']
    #allocation3 [shape = 's32[1]{0}', space=sflag, size = 0x4, scoped, tag = 'scoped memory for tpu_custom_call.1']
    #allocation4 [shape = 's32[1]{0}', space=sflag, size = 0x4, scoped, tag = 'scoped memory for tpu_custom_call.1']
    #allocation5 [shape = 'u8[8192]{0}', space=vmem, size = 0x2000, scoped, tag = 'input window, operand 1, single buffered']
    #allocation6 [shape = 's32[1]{0}', space=sflag, size = 0x4, scoped, tag = 'scoped memory for tpu_custom_call.1']
    #allocation7 [shape = 'u8[4096]{0}', space=vmem, size = 0x1000, scoped, tag = 'output window, operand 0, single buffered']
    %8 = vsyncpa [#allocation3], 0
    %9 = vsyncpa [#allocation6], 0
    %10 = vsyncpa [#allocation4], 0
    // Predicated region
    $region2: #{tpu_custom_call.1} parent=1 // pred_check
      _
    $region3: #{tpu_custom_call.1} parent=1 // pred_check_branch
      %12 = sbr.rel (0) target = $region5
    $region4: #{tpu_custom_call.1} parent=1 // pred_region
      %s14 = ssub.s32 128, 128
      %15 = vsyncadd [#allocation3], %s14
      %s16 = sshll.u32 [#allocation2], 4
      %s17 = int_to_ptr.vmem [resolvable:$true] %s16
      %22 = dma.hbm_to_vmem [thread:$0]  %s0, 128, %s17, [#allocation3], 64, 64, 4
    $region5: #{tpu_custom_call.1} parent=1 // pred_fallthru
      _
    // Predicated region
    $region6: #{tpu_custom_call.1} parent=1 // pred_check
      _
    $region7: #{tpu_custom_call.1} parent=1 // pred_check_branch
      %24 = sbr.rel (0) target = $region9
    $region8: #{tpu_custom_call.1} parent=1 // pred_region
      %s26 = ssub.s32 256, 256
      %27 = vsyncadd [#allocation6], %s26
      %s28 = sshll.u32 [#allocation5], 4
      %s29 = int_to_ptr.vmem [resolvable:$true] %s28
      %34 = dma.hbm_to_vmem [thread:$0]  %s1, 256, %s29, [#allocation6], 64, 64, 4
    $region9: #{tpu_custom_call.1} parent=1 // pred_fallthru
      _
    // Predicated region
    $region10: #{tpu_custom_call.1} parent=1 // pred_check
      _
    $region11: #{tpu_custom_call.1} parent=1 // pred_check_branch
      %36 = sbr.rel (0) target = $region13
    $region12: #{tpu_custom_call.1} parent=1 // pred_region
      _
    $region13: #{tpu_custom_call.1} parent=1 // pred_fallthru
      _
    // Predicated region
    $region14: #{tpu_custom_call.1} parent=1 // pred_check
      _
    $region15: #{tpu_custom_call.1} parent=1 // pred_check_branch
      %38 = sbr.rel (0) target = $region17
    $region16: #{tpu_custom_call.1} parent=1 // pred_region
      %39 = dma.done [#allocation3], 128
    $region17: #{tpu_custom_call.1} parent=1 // pred_fallthru
      _
    // Predicated region
    $region18: #{tpu_custom_call.1} parent=1 // pred_check
      _
    $region19: #{tpu_custom_call.1} parent=1 // pred_check_branch
      %41 = sbr.rel (0) target = $region21
    $region20: #{tpu_custom_call.1} parent=1 // pred_region
      %42 = dma.done [#allocation6], 256
    $region21: #{tpu_custom_call.1} parent=1 // pred_fallthru
      _
    %v44 = vld [vmem:[#allocation2] sm:$0xf]
    %v45 = vld [vmem:[#allocation2 + $0x4] sm:$0xf]
    %v46 = vld [vmem:[#allocation5] sm:$0xf]
    %v47 = vld [vmem:[#allocation5 + $0x4] sm:$0xf]
    %v48 = vld [vmem:[#allocation5 + $0x8] sm:$0xf]
    %v49 = vld [vmem:[#allocation5 + $0xc] sm:$0xf]
    %v50 = vld [vmem:[%s2] sm:$0x1]
    %v52 = vlaneseq
    %v53 = vshrl.u32 %v52, 7
    %v54 = vsub.s32 0, %v53
    %v55 = vrot.slane %v50, %v54
    %v59 = vunpack.c.l.b16 %v44
    %v60 = vunpack.c.l.b16 %v45
    %v61 = vpack.c.b16 %v60, %v59
    %v66 = vunpack.c.l.b16 %v46
    %v67 = vunpack.c.l.b16 %v47
    %v68 = vunpack.c.l.b16 %v48
    %v69 = vunpack.c.l.b16 %v49
    %v70 = vpack.c.b16 %v67, %v66
    %v71 = vpack.c.b16 %v69, %v68
    %vm74 = vcmask 261120
    %v76 = vsel %vm74, %v61, 0
    %78 = vmatprep.subr.bf16.mxu0 0
    %79 = vmatpush1.bf16.msra.mxu0 0
    %80 = vmatprep.subr.bf16.mxu0 0
    %81 = vmatpush1.bf16.msra.mxu0 0
    %82 = vmatprep.subr.bf16.mxu0 0
    %83 = vmatpush1.bf16.msra.mxu0 0
    %84 = vmatprep.subr.bf16.mxu0 0
    %85 = vmatpush1.bf16.msra.mxu0 0
    %86 = vmatprep.subr.bf16.mxu0 0
    %87 = vmatpush1.bf16.msra.mxu0 0
    %88 = vmatprep.subr.bf16.mxu0 0
    %89 = vmatpush1.bf16.msra.mxu0 0
    %90 = vmatprep.subr.bf16.mxu0 0
    %91 = vmatpush1.bf16.msra.mxu0 %v71
    %92 = vmatprep.subr.bf16.mxu0 0
    %93 = vmatpush1.bf16.msra.mxu0 %v70
    %94 = vmatprep.subr.bf16.mxu0 0
    %95 = vmatpush2.bf16.msra.mxu0 0
    %96 = vmatprep.subr.bf16.mxu0 0
    %97 = vmatpush2.bf16.msra.mxu0 0
    %98 = vmatprep.subr.bf16.mxu0 0
    %99 = vmatpush2.bf16.msra.mxu0 0
    %100 = vmatprep.subr.bf16.mxu0 0
    %101 = vmatpush2.bf16.msra.mxu0 0
    %102 = vmatprep.subr.bf16.mxu0 0
    %103 = vmatpush2.bf16.msra.mxu0 0
    %104 = vmatprep.subr.bf16.mxu0 0
    %105 = vmatpush2.bf16.msra.mxu0 0
    %106 = vmatprep.subr.bf16.mxu0 0
    %107 = vmatpush2.bf16.msra.mxu0 0
    %108 = vmatprep.subr.bf16.mxu0 0
    %109 = vmatpush2.bf16.msra.mxu0 0
    %110 = vmatprep.mubr.bf16.mxu0 0
    %111 = vmatmul.mubr.bf16.gmra.mxu0 %v76
    %v112 = vpop.f32.mrf.mxu0
    %v113 = vadd.f32 %v55, %v112
    %v114 = vpop.f32.mrf.mxu0
    %v115 = vpop.f32.mrf.mxu0
    %v116 = vadd.f32 %v55, %v115
    %v117 = vpop.f32.mrf.mxu0
    %118 = vdwg.mxu0
    %v119 = vpack.c.bf16 %v116, %v113
    %v121 = vunpack.c.l.b16 %v119
    %v122 = vunpack.c.h.b16 %v119
    %v123 = vpack.c.b16 %v121, %v121
    %v124 = vpack.c.b16 %v122, %v122
    %vm127 = vcmask 781312
    %128 = vst.msk [vmem:[#allocation7] sm:$0xf] %vm127, %v123
    %129 = vst.msk [vmem:[#allocation7 + $0x4] sm:$0xf] %vm127, %v124
    // Predicated region
    $region22: #{tpu_custom_call.1} parent=1 // pred_check
      _
    $region23: #{tpu_custom_call.1} parent=1 // pred_check_branch
      %131 = sbr.rel (0) target = $region25
    $region24: #{tpu_custom_call.1} parent=1 // pred_region
      %s133 = ssub.s32 128, 128
      %134 = vsyncadd [#allocation4], %s133
      %s135 = sshll.u32 [#allocation7], 4
      %s136 = int_to_ptr.vmem [resolvable:$true] %s135
      %141 = dma.vmem_to_hbm [thread:$0]  %s136, 128, %s3, [#allocation4], 64, 64, 4
    $region25: #{tpu_custom_call.1} parent=1 // pred_fallthru
      _
    // Predicated region
    $region26: #{tpu_custom_call.1} parent=1 // pred_check
      _
    $region27: #{tpu_custom_call.1} parent=1 // pred_check_branch
      %143 = sbr.rel (0) target = $region29
    $region28: #{tpu_custom_call.1} parent=1 // pred_region
      %144 = dma.done [#allocation4], 128
    $region29: #{tpu_custom_call.1} parent=1 // pred_fallthru
      _
    %145 = vsyncpa [#allocation3], 1
    %146 = vsyncpa [#allocation6], 1
    %147 = vsyncpa [#allocation4], 1

</llo_original>
